<compile_context>
chip_gen: v5e
topology: v5e:2x2
jax: 0.10.0
libtpu: 0.0.40
codegen_flags: <defaults>
</compile_context>

<pallas_src>
import jax
import jax.numpy as jnp
from jax.experimental import pallas as pl
from jax.experimental.pallas import tpu as pltpu


def _gnn_fused_kernel(x_ref, adj_ref, w1_ref, b1_ref, w2_ref, b2_ref,
                      alpha_ref, o_ref):
    # x_ref:    (Bt, N, Cin)     VMEM
    # adj_ref:  (Bt, N, N)       VMEM
    # w1_ref:   (Cin, H)         VMEM (resident across grid steps)
    # b1_ref:   (1, H)           VMEM
    # w2_ref:   (H, Cout_p)      VMEM (Cout padded to a multiple of 128)
    # b2_ref:   (1, Cout_p)      VMEM
    # alpha_ref:(2,)             SMEM  [a1, a2]
    # o_ref:    (Bt, N, Cout_p)  VMEM
    bt, n, cin = x_ref.shape
    h_dim = w1_ref.shape[1]
    cout_p = w2_ref.shape[1]
    cdt = x_ref.dtype                      # matmul-operand dtype (no forced f32)

    a1 = alpha_ref[0]
    a2 = alpha_ref[1]

    # ---- adjacency normalization: computed ONCE, shared by both layers ------
    row = jax.lax.broadcasted_iota(jnp.int32, (n, n), 0)
    col = jax.lax.broadcasted_iota(jnp.int32, (n, n), 1)
    diag = (row == col)[None, :, :]

    adjf = adj_ref[...].astype(jnp.float32)
    adjf = jnp.where(diag, jnp.float32(1.0), adjf)                 # self loops
    deg = jnp.maximum(jnp.sum(adjf, axis=-1, keepdims=True), 1.0)  # (Bt, N, 1)
    dinv = jax.lax.rsqrt(deg)                                      # (Bt, N, 1)
    adj_mm = adjf.astype(cdt)

    # Hoisted bias broadcasts (added once on the batched tensors below).
    b1 = b1_ref[...].astype(jnp.float32)[None]                     # (1, 1, H)
    b2 = b2_ref[...].astype(jnp.float32)[None]                     # (1, 1, Cout_p)

    # D^-1/2 A D^-1/2 @ M  ==  dinv * (A @ (dinv * M))   (transpose-free)

    # ---- layer 1: DenseGCNConv(Cin -> H) + PReLU(a1) -------------------------
    # Batched feature matmul over bt*N rows fills the MXU M dimension.
    xw = jnp.dot(x_ref[...].reshape(bt * n, cin), w1_ref[...],
                 preferred_element_type=jnp.float32).reshape(bt, n, h_dim)
    h = dinv * jnp.einsum('bij,bjh->bih', adj_mm, (dinv * xw).astype(cdt),
                          preferred_element_type=jnp.float32)
    h = h + b1
    h = jnp.maximum(h, 0.0) + a1 * jnp.minimum(h, 0.0)

    # ---- layer 2: DenseGCNConv(H -> Cout) + PReLU(a2) ------------------------
    hw = jnp.dot(h.reshape(bt * n, h_dim).astype(cdt), w2_ref[...],
                 preferred_element_type=jnp.float32).reshape(bt, n, cout_p)
    out = dinv * jnp.einsum('bij,bjc->bic', adj_mm, (dinv * hw).astype(cdt),
                            preferred_element_type=jnp.float32)
    out = out + b2
    out = jnp.maximum(out, 0.0) + a2 * jnp.minimum(out, 0.0)

    o_ref[...] = out.astype(o_ref.dtype)


def _round_up(v, m):
    return ((v + m - 1) // m) * m


def _vmem_estimate(bt, N, Cin, H, Cout_p, in_itemsize, out_itemsize):
    """Rough VMEM use: double-buffered blocks + resident weights + f32 temps."""
    blocks = bt * N * (N + Cin) * in_itemsize + bt * N * Cout_p * out_itemsize
    resident = 2 * ((Cin * H + H) + (H * Cout_p + Cout_p)) * 4
    scratch = 2 * bt * N * (H + Cout_p) * 4
    return 2 * blocks + resident + scratch


def _pick_batch_block(B, N, Cin, H, Cout_p, in_itemsize, out_itemsize,
                      budget_bytes, min_steps=8):
    """Largest divisor of B that fits the VMEM budget while keeping
    >= min_steps grid steps (so both v7x TensorCores get pipelined work)."""
    target_steps = min(min_steps, B)
    best = 1
    for bt in range(1, B + 1):
        if B % bt:
            continue
        est = _vmem_estimate(bt, N, Cin, H, Cout_p, in_itemsize, out_itemsize)
        if est <= budget_bytes and (B // bt) >= target_steps:
            best = bt
    return best


def gnn_forward(params, x, adj, mask=None):
    """Fused GNN forward: (DenseGCNConv -> PReLU) x 2 in one pallas_call.

    x: (B, N, Cin), adj: (B, N, N).
    """
    if mask is not None:
        # TODO(synk): node-mask multiply (out * mask[:, :, None]) per layer is
        # not wired into the fused kernel.
        raise NotImplementedError("mask is not supported by the fused kernel")

    B, N, Cin = x.shape
    H = params["w1"].shape[1]
    Cout = params["w2"].shape[1]

    # Lane-dense output: pad Cout to a multiple of 128 (zero-padded W2/b2
    # columns produce exact zeros), slice the pad off outside the kernel.
    Cout_p = _round_up(Cout, 128)
    w2 = params["w2"]
    b2 = params["b2"].reshape(1, Cout)
    if Cout_p != Cout:
        w2 = jnp.pad(w2, ((0, 0), (0, Cout_p - Cout)))
        b2 = jnp.pad(b2, ((0, 0), (0, Cout_p - Cout)))
    b1 = params["b1"].reshape(1, H)
    alphas = jnp.stack([params["a1"], params["a2"]]).astype(jnp.float32)  # (2,)

    in_itemsize = max(x.dtype.itemsize, adj.dtype.itemsize)
    out_itemsize = x.dtype.itemsize

    # VMEM-budget-driven block choice; 24 MiB is safe on v5e/v6e/v7x.
    budget = 24 * 1024 * 1024
    bt = _pick_batch_block(B, N, Cin, H, Cout_p, in_itemsize, out_itemsize,
                           budget)
    steps = B // bt

    est = _vmem_estimate(bt, N, Cin, H, Cout_p, in_itemsize, out_itemsize)
    vmem_limit = int(min(max(2 * est, 16 * 1024 * 1024), 48 * 1024 * 1024))

    out_p = pl.pallas_call(
        _gnn_fused_kernel,
        out_shape=jax.ShapeDtypeStruct((B, N, Cout_p), x.dtype),
        grid=(steps,),
        in_specs=[
            pl.BlockSpec((bt, N, Cin), lambda i: (i, 0, 0)),
            pl.BlockSpec((bt, N, N), lambda i: (i, 0, 0)),
            pl.BlockSpec((Cin, H), lambda i: (0, 0)),
            pl.BlockSpec((1, H), lambda i: (0, 0)),
            pl.BlockSpec((H, Cout_p), lambda i: (0, 0)),
            pl.BlockSpec((1, Cout_p), lambda i: (0, 0)),
            pl.BlockSpec(memory_space=pltpu.MemorySpace.SMEM),   # alphas
        ],
        out_specs=pl.BlockSpec((bt, N, Cout_p), lambda i: (i, 0, 0)),
        compiler_params=pltpu.CompilerParams(
            dimension_semantics=("parallel",),
            vmem_limit_bytes=vmem_limit),
    )(x, adj, params["w1"], b1, w2, b2, alphas)

    return out_p[..., :Cout] if Cout_p != Cout else out_p


def init_gnn_params(key, in_channels, hidden_channels, out_channels):
    """Deterministic init mirroring DenseGCNConv (glorot weight, zero bias)
    and PReLU (alpha=0.25)."""
    k1, k2 = jax.random.split(key, 2)

    def glorot(k, fan_in, fan_out):
        limit = jnp.sqrt(6.0 / (fan_in + fan_out))
        return jax.random.uniform(k, (fan_in, fan_out), jnp.float32,
                                  -limit, limit)

    return {
        "w1": glorot(k1, in_channels, hidden_channels),
        "b1": jnp.zeros((hidden_channels,), jnp.float32),
        "a1": jnp.array(0.25, jnp.float32),
        "w2": glorot(k2, hidden_channels, out_channels),
        "b2": jnp.zeros((out_channels,), jnp.float32),
        "a2": jnp.array(0.25, jnp.float32),
    }


def _gnn_reference(params, x, adj):
    """Pure-JAX reference (same math, XLA ops) for a correctness cross-check."""
    def layer(h, w, b, a):
        n = adj.shape[-1]
        eye = jnp.eye(n, dtype=adj.dtype)[None]
        adj1 = adj * (1.0 - eye) + eye                      # diag set to 1
        deg = jnp.clip(adj1.sum(-1, keepdims=True), 1.0, None)
        dinv = deg ** -0.5
        ahat = dinv * adj1 * jnp.swapaxes(dinv, -1, -2)
        out = jnp.einsum("bij,bjc->bic", ahat, h @ w) + b
        return jnp.maximum(out, 0.0) + a * jnp.minimum(out, 0.0)

    h = layer(x, params["w1"], params["b1"], params["a1"])
    return layer(h, params["w2"], params["b2"], params["a2"])


if __name__ == "__main__":
    key = jax.random.PRNGKey(0)
    kx, kadj, kp = jax.random.split(key, 3)

    B, N = 2, 16
    in_channels, hidden_channels, out_channels = 8, 32, 16

    x = jax.random.normal(kx, (B, N, in_channels), jnp.float32)
    # symmetric 0/1 adjacency, no self loops (kernel adds them)
    a = (jax.random.uniform(kadj, (B, N, N)) > 0.7).astype(jnp.float32)
    adj = jnp.maximum(a, jnp.transpose(a, (0, 2, 1)))
    eye = jnp.eye(N, dtype=jnp.float32)[None]
    adj = adj * (1.0 - eye)

    params = init_gnn_params(kp, in_channels, hidden_channels, out_channels)

    out = gnn_forward(params, x, adj)
    jax.block_until_ready(out)
    assert out.shape == (B, N, out_channels)

    ref = _gnn_reference(params, x, adj)
    assert jnp.allclose(out, ref, rtol=1e-3, atol=1e-3), "mismatch vs reference"

    print("KERNEL_OK")
</pallas_src>

<mosaic_0001>
module attributes {stable_mosaic.version = 11 : i64} {
  func.func @_gnn_fused_kernel(%arg0: i32, %arg1: memref<1x16x8xf32, #tpu.memory_space<vmem>>, %arg2: memref<1x16x16xf32, #tpu.memory_space<vmem>>, %arg3: memref<8x32xf32, #tpu.memory_space<vmem>>, %arg4: memref<1x32xf32, #tpu.memory_space<vmem>>, %arg5: memref<32x128xf32, #tpu.memory_space<vmem>>, %arg6: memref<1x128xf32, #tpu.memory_space<vmem>>, %arg7: memref<2xf32, #tpu.memory_space<smem>>, %arg8: memref<1x16x128xf32, #tpu.memory_space<vmem>>) attributes {dimension_semantics = [#tpu.dimension_semantics<parallel>], iteration_bounds = array<i64: 2>, scalar_prefetch = 0 : i64, scratch_operands = 0 : i64, tpu.core_type = #tpu.core_type<tc>, window_params = [{transform_indices = @transform_0, window_bounds = array<i64: 1, 16, 8>}, {transform_indices = @transform_1, window_bounds = array<i64: 1, 16, 16>}, {pipeline_mode = #tpu.pipeline_mode<synchronous>, transform_indices = @transform_2, window_bounds = array<i64: 8, 32>}, {pipeline_mode = #tpu.pipeline_mode<synchronous>, transform_indices = @transform_3, window_bounds = array<i64: 1, 32>}, {pipeline_mode = #tpu.pipeline_mode<synchronous>, transform_indices = @transform_4, window_bounds = array<i64: 32, 128>}, {pipeline_mode = #tpu.pipeline_mode<synchronous>, transform_indices = @transform_5, window_bounds = array<i64: 1, 128>}, {transform_indices = @transform_6, window_bounds = array<i64: 2>}, {transform_indices = @transform_7, window_bounds = array<i64: 1, 16, 128>}]} {
    %c0 = arith.constant 0 : index
    %0 = memref.load %arg7[%c0] : memref<2xf32, #tpu.memory_space<smem>>
    %c1 = arith.constant 1 : index
    %1 = memref.load %arg7[%c1] : memref<2xf32, #tpu.memory_space<smem>>
    %2 = tpu.iota {dimensions = array<i32: 0>} : vector<16x16xi32>
    %3 = tpu.iota {dimensions = array<i32: 1>} : vector<16x16xi32>
    %4 = arith.cmpi eq, %2, %3 : vector<16x16xi32>
    %5 = vector.shape_cast %4 : vector<16x16xi1> to vector<1x16x16xi1>
    %c0_0 = arith.constant 0 : index
    %c0_1 = arith.constant 0 : index
    %c0_2 = arith.constant 0 : index
    %6 = vector.load %arg2[%c0_0, %c0_1, %c0_2] : memref<1x16x16xf32, #tpu.memory_space<vmem>>, vector<1x16x16xf32>
    %cst = arith.constant 1.000000e+00 : f32
    %7 = vector.broadcast %cst : f32 to vector<1x16x16xf32>
    %8 = arith.select %5, %7, %6 : vector<1x16x16xi1>, vector<1x16x16xf32>
    %cst_3 = arith.constant dense<0.000000e+00> : vector<1x16xf32>
    %9 = vector.multi_reduction <add>, %8, %cst_3 [2] : vector<1x16x16xf32> to vector<1x16xf32>
    %10 = vector.shape_cast %9 : vector<1x16xf32> to vector<1x16x1xf32>
    %cst_4 = arith.constant 1.000000e+00 : f32
    %11 = vector.broadcast %cst_4 : f32 to vector<1x16x1xf32>
    %12 = arith.maximumf %10, %11 : vector<1x16x1xf32>
    %13 = math.rsqrt %12 : vector<1x16x1xf32>
    %c0_5 = arith.constant 0 : index
    %c0_6 = arith.constant 0 : index
    %14 = vector.load %arg4[%c0_5, %c0_6] : memref<1x32xf32, #tpu.memory_space<vmem>>, vector<1x32xf32>
    %15 = vector.shape_cast %14 : vector<1x32xf32> to vector<1x1x32xf32>
    %c0_7 = arith.constant 0 : index
    %c0_8 = arith.constant 0 : index
    %16 = vector.load %arg6[%c0_7, %c0_8] : memref<1x128xf32, #tpu.memory_space<vmem>>, vector<1x128xf32>
    %17 = vector.shape_cast %16 : vector<1x128xf32> to vector<1x1x128xf32>
    %c0_9 = arith.constant 0 : index
    %c0_10 = arith.constant 0 : index
    %c0_11 = arith.constant 0 : index
    %18 = vector.load %arg1[%c0_9, %c0_10, %c0_11] : memref<1x16x8xf32, #tpu.memory_space<vmem>>, vector<1x16x8xf32>
    %19 = vector.shape_cast %18 : vector<1x16x8xf32> to vector<16x8xf32>
    %c0_12 = arith.constant 0 : index
    %c0_13 = arith.constant 0 : index
    %20 = vector.load %arg3[%c0_12, %c0_13] : memref<8x32xf32, #tpu.memory_space<vmem>>, vector<8x32xf32>
    %cst_14 = arith.constant dense<0.000000e+00> : vector<16x32xf32>
    %21 = tpu.matmul %19, %20, %cst_14 {dimension_numbers = #tpu.dot_dimension_numbers<[1], [0], [0], [1], [0, 0, 1, 1], [], []>} : vector<16x8xf32>, vector<8x32xf32>, vector<16x32xf32> -> vector<16x32xf32>
    %22 = vector.shape_cast %21 : vector<16x32xf32> to vector<1x16x32xf32>
    %23 = vector.broadcast %13 : vector<1x16x1xf32> to vector<1x16x32xf32>
    %24 = arith.mulf %23, %22 : vector<1x16x32xf32>
    "tpu.trace_start"() <{level = 10 : i32, message = "bij,bjh->bih"}> : () -> ()
    %cst_15 = arith.constant dense<0.000000e+00> : vector<1x16x32xf32>
    %25 = tpu.matmul %8, %24, %cst_15 {dimension_numbers = #tpu.dot_dimension_numbers<[2], [1], [1], [2], [0, 0, 0, 1, 1, 2], [0], [0]>} : vector<1x16x16xf32>, vector<1x16x32xf32>, vector<1x16x32xf32> -> vector<1x16x32xf32>
    "tpu.trace_stop"() : () -> ()
    %26 = vector.broadcast %13 : vector<1x16x1xf32> to vector<1x16x32xf32>
    %27 = arith.mulf %26, %25 : vector<1x16x32xf32>
    %28 = vector.broadcast %15 : vector<1x1x32xf32> to vector<1x16x32xf32>
    %29 = arith.addf %27, %28 : vector<1x16x32xf32>
    %cst_16 = arith.constant 0.000000e+00 : f32
    %30 = vector.broadcast %cst_16 : f32 to vector<1x16x32xf32>
    %31 = arith.maximumf %29, %30 : vector<1x16x32xf32>
    %cst_17 = arith.constant 0.000000e+00 : f32
    %32 = vector.broadcast %cst_17 : f32 to vector<1x16x32xf32>
    %33 = arith.minimumf %29, %32 : vector<1x16x32xf32>
    %34 = vector.broadcast %0 : f32 to vector<1x16x32xf32>
    %35 = arith.mulf %34, %33 : vector<1x16x32xf32>
    %36 = arith.addf %31, %35 : vector<1x16x32xf32>
    %37 = vector.shape_cast %36 : vector<1x16x32xf32> to vector<16x32xf32>
    %c0_18 = arith.constant 0 : index
    %c0_19 = arith.constant 0 : index
    %38 = vector.load %arg5[%c0_18, %c0_19] : memref<32x128xf32, #tpu.memory_space<vmem>>, vector<32x128xf32>
    %cst_20 = arith.constant dense<0.000000e+00> : vector<16x128xf32>
    %39 = tpu.matmul %37, %38, %cst_20 {dimension_numbers = #tpu.dot_dimension_numbers<[1], [0], [0], [1], [0, 0, 1, 1], [], []>} : vector<16x32xf32>, vector<32x128xf32>, vector<16x128xf32> -> vector<16x128xf32>
    %40 = vector.shape_cast %39 : vector<16x128xf32> to vector<1x16x128xf32>
    %41 = vector.broadcast %13 : vector<1x16x1xf32> to vector<1x16x128xf32>
    %42 = arith.mulf %41, %40 : vector<1x16x128xf32>
    "tpu.trace_start"() <{level = 10 : i32, message = "bij,bjc->bic"}> : () -> ()
    %cst_21 = arith.constant dense<0.000000e+00> : vector<1x16x128xf32>
    %43 = tpu.matmul %8, %42, %cst_21 {dimension_numbers = #tpu.dot_dimension_numbers<[2], [1], [1], [2], [0, 0, 0, 1, 1, 2], [0], [0]>} : vector<1x16x16xf32>, vector<1x16x128xf32>, vector<1x16x128xf32> -> vector<1x16x128xf32>
    "tpu.trace_stop"() : () -> ()
    %44 = vector.broadcast %13 : vector<1x16x1xf32> to vector<1x16x128xf32>
    %45 = arith.mulf %44, %43 : vector<1x16x128xf32>
    %46 = vector.broadcast %17 : vector<1x1x128xf32> to vector<1x16x128xf32>
    %47 = arith.addf %45, %46 : vector<1x16x128xf32>
    %cst_22 = arith.constant 0.000000e+00 : f32
    %48 = vector.broadcast %cst_22 : f32 to vector<1x16x128xf32>
    %49 = arith.maximumf %47, %48 : vector<1x16x128xf32>
    %cst_23 = arith.constant 0.000000e+00 : f32
    %50 = vector.broadcast %cst_23 : f32 to vector<1x16x128xf32>
    %51 = arith.minimumf %47, %50 : vector<1x16x128xf32>
    %52 = vector.broadcast %1 : f32 to vector<1x16x128xf32>
    %53 = arith.mulf %52, %51 : vector<1x16x128xf32>
    %54 = arith.addf %49, %53 : vector<1x16x128xf32>
    %c0_24 = arith.constant 0 : index
    %c0_25 = arith.constant 0 : index
    %c0_26 = arith.constant 0 : index
    %55 = vector.load %arg8[%c0_24, %c0_25, %c0_26] : memref<1x16x128xf32, #tpu.memory_space<vmem>>, vector<1x16x128xf32>
    tpu.vector_store %arg8[%c0_24, %c0_25, %c0_26], %54 {strides = array<i32>} : memref<1x16x128xf32, #tpu.memory_space<vmem>>, vector<1x16x128xf32>,
    return
  }
  func.func @transform_0(%arg0: i32) -> (i32, i32, i32) {
    %c0_i32 = arith.constant 0 : i32
    %c0_i32_0 = arith.constant 0 : i32
    %c0_i32_1 = arith.constant 0 : i32
    return %arg0, %c0_i32, %c0_i32_0 : i32, i32, i32
  }
  func.func @transform_1(%arg0: i32) -> (i32, i32, i32) {
    %c0_i32 = arith.constant 0 : i32
    %c0_i32_0 = arith.constant 0 : i32
    %c0_i32_1 = arith.constant 0 : i32
    return %arg0, %c0_i32, %c0_i32_0 : i32, i32, i32
  }
  func.func @transform_2(%arg0: i32) -> (i32, i32) {
    %c0_i32 = arith.constant 0 : i32
    %c0_i32_0 = arith.constant 0 : i32
    %c0_i32_1 = arith.constant 0 : i32
    return %c0_i32, %c0_i32_0 : i32, i32
  }
  func.func @transform_3(%arg0: i32) -> (i32, i32) {
    %c0_i32 = arith.constant 0 : i32
    %c0_i32_0 = arith.constant 0 : i32
    %c0_i32_1 = arith.constant 0 : i32
    return %c0_i32, %c0_i32_0 : i32, i32
  }
  func.func @transform_4(%arg0: i32) -> (i32, i32) {
    %c0_i32 = arith.constant 0 : i32
    %c0_i32_0 = arith.constant 0 : i32
    %c0_i32_1 = arith.constant 0 : i32
    return %c0_i32, %c0_i32_0 : i32, i32
  }
  func.func @transform_5(%arg0: i32) -> (i32, i32) {
    %c0_i32 = arith.constant 0 : i32
    %c0_i32_0 = arith.constant 0 : i32
    %c0_i32_1 = arith.constant 0 : i32
    return %c0_i32, %c0_i32_0 : i32, i32
  }
  func.func @transform_6(%arg0: i32) -> i32 {
    %c0_i32 = arith.constant 0 : i32
    %c0_i32_0 = arith.constant 0 : i32
    return %c0_i32 : i32
  }
  func.func @transform_7(%arg0: i32) -> (i32, i32, i32) {
    %c0_i32 = arith.constant 0 : i32
    %c0_i32_0 = arith.constant 0 : i32
    %c0_i32_1 = arith.constant 0 : i32
    return %arg0, %c0_i32, %c0_i32_0 : i32, i32, i32
  }
}

</mosaic_0001>

<llo_original>
// kernel: tpu_custom_call.1
$region0: #{tpu_custom_call.1}
  #allocation0 [shape = 'u32[]', space=smem, size = 0x4, offset = 0x4, fixed_abs, tag = 'smem constant byte address 0x4 - core index']
  #allocation1 [shape = 'u32[72,128]{1,0:T(1,128)}', space=vmem, size = 0x9000, scoped, tag = 'internal scratch']
  %s0 = inlined_call_operand.vmem [shape: f32[2,16,8], index: 0, kind: input, shape index: {}]
  %s1 = inlined_call_operand.vmem [shape: f32[2,16,16], index: 1, kind: input, shape index: {}]
  %s2 = inlined_call_operand.vmem [shape: f32[8,32], index: 2, kind: input, shape index: {}]
  %s3 = inlined_call_operand.vmem [shape: f32[1,32], index: 3, kind: input, shape index: {}]
  %s4 = inlined_call_operand.hbm [shape: f32[32,128], index: 4, kind: input, shape index: {}]
  %s5 = inlined_call_operand.vmem [shape: f32[1,128], index: 5, kind: input, shape index: {}]
  %s6 = inlined_call_operand.vmem [shape: f32[2], index: 6, kind: input, shape index: {}]
  %s7 = inlined_call_operand.hbm [shape: f32[2,16,128], index: 7, kind: output, shape index: {}]
  %s8 = sld [smem:[#allocation0]]
  $region69: #{tpu_custom_call.1} parent=0
    _
  %s10 = ssub.s32 1, %s8
  %s11 = scalar_select 0, %s10, %s8
  $region1: #{tpu_custom_call.1} parent=0
    #allocation2 [shape = 'u8[16384]{0}', space=vmem, size = 0x4000, scoped, tag = 'input window, operand 4, single buffered']
    #allocation3 [shape = 's32[2]{0}', space=sflag, size = 0x8, scoped, tag = 'scoped memory for tpu_custom_call.1']
    #allocation4 [shape = 's32[2]{0}', space=sflag, size = 0x8, scoped, tag = 'scoped memory for tpu_custom_call.1']
    #allocation5 [shape = 's32[2]{0}', space=sflag, size = 0x8, scoped, tag = 'scoped memory for tpu_custom_call.1']
    #allocation6 [shape = 'u8[512]{0}', space=smem, size = 0x200, scoped, tag = 'input window, operand 6, single buffered']
    #allocation7 [shape = 'u8[16384]{0}', space=vmem, size = 0x4000, scoped, tag = 'output window, operand 0']
    %12 = vsyncpa [#allocation3], 0
    %13 = vsyncpa [#allocation5], 0
    %14 = vsyncpa [#allocation4], 0
    %s15 = scalar_lea.sflag [#allocation4], 1
    %16 = vsyncpa %s15, 0
    loop: start=0, step=1, limit=4
    $region2: #{tpu_custom_call.1} parent=1 // loop_pre_header
      _
    $region3: #{tpu_custom_call.1} parent=1 // loop_header
      %s18 = sphi 0, %s22
      %p19 = scmp.ge.s32.totalorder %s18, 4
      %s28 = sphi 0, %s30
      %s31 = sphi 0, %s28
      %s32 = sphi 0, %s31
      %s48 = sphi 0, %s32
      %s54 = sphi 0, %s56
      %s57 = sphi 0, %s54
      %s58 = sphi 0, %s57
      %s74 = sphi 0, %s58
      %s78 = sphi 0, %s78
      %s80 = sphi 0, %s78
      %s81 = sphi 0, %s80
      %s95 = sphi 0, %s81
      %s99 = sphi 0, %s99
      %s101 = sphi 0, %s99
      %s102 = sphi 0, %s101
      %s116 = sphi 0, %s102
      %s120 = sphi 0, %s120
      %s122 = sphi 0, %s120
      %s123 = sphi 0, %s122
      %s137 = sphi 0, %s123
      %s141 = sphi 0, %s141
      %s143 = sphi 0, %s141
      %s144 = sphi 0, %s143
      %s158 = sphi 0, %s144
      %s162 = sphi 0, %s162
      %s164 = sphi 0, %s162
      %s165 = sphi 0, %s164
      %s179 = sphi 0, %s165
      %s185 = sphi 0, %s187
      %s188 = sphi 0, %s185
      %s189 = sphi 0, %s188
      %s205 = sphi 0, %s189
    $region4: #{tpu_custom_call.1} parent=1 // loop_header_branch
      %21 = sbr.rel (%p19) target = $region8
    $region5: #{tpu_custom_call.1} parent=1 // loop_body
      %s23 = ssub.s32 %s18, 1
      %s24 = ssub.s32 %s18, 2
      %s25 = sadd.s32 %s18, 1
      %s26 = ssub.s32 %s18, %s25
      %p27 = scmp.eq.s32.totalorder %s26, 0
      %s29 = sadd.s32 %s28, 1
      %s30 = scalar_select %p27, %s28, %s29
      %p33 = pneg %p27
      %p34 = scmp.eq.s32.totalorder %s18, 1
      %p35 = por %p33, %p34
      %p36 = scmp.ne.s32.totalorder %s28, %s31
      %p37 = scmp.eq.s32.totalorder %s18, 0
      %p38 = por %p36, %p37
      %p39 = scmp.ne.s32.totalorder %s28, %s31
      %p40 = scmp.eq.s32.totalorder %s23, 1
      %p41 = por %p39, %p40
      %p42 = scmp.ne.s32.totalorder %s31, %s32
      %p43 = scmp.eq.s32.totalorder %s23, 0
      %p44 = por %p42, %p43
      %p45 = scmp.ne.s32.totalorder %s31, %s32
      %p46 = scmp.eq.s32.totalorder %s24, 1
      %p47 = por %p45, %p46
      %p49 = scmp.ne.s32.totalorder %s32, %s48
      %p50 = scmp.eq.s32.totalorder %s24, 0
      %p51 = por %p49, %p50
      %s52 = ssub.s32 %s18, %s25
      %p53 = scmp.eq.s32.totalorder %s52, 0
      %s55 = sadd.s32 %s54, 1
      %s56 = scalar_select %p53, %s54, %s55
      %p59 = pneg %p53
      %p60 = scmp.eq.s32.totalorder %s18, 1
      %p61 = por %p59, %p60
      %p62 = scmp.ne.s32.totalorder %s54, %s57
      %p63 = scmp.eq.s32.totalorder %s18, 0
      %p64 = por %p62, %p63
      %p65 = scmp.ne.s32.totalorder %s54, %s57
      %p66 = scmp.eq.s32.totalorder %s23, 1
      %p67 = por %p65, %p66
      %p68 = scmp.ne.s32.totalorder %s57, %s58
      %p69 = scmp.eq.s32.totalorder %s23, 0
      %p70 = por %p68, %p69
      %p71 = scmp.ne.s32.totalorder %s57, %s58
      %p72 = scmp.eq.s32.totalorder %s24, 1
      %p73 = por %p71, %p72
      %p75 = scmp.ne.s32.totalorder %s58, %s74
      %p76 = scmp.eq.s32.totalorder %s24, 0
      %p77 = por %p75, %p76
      %s79 = sadd.s32 %s78, 1
      %p82 = scmp.eq.s32.totalorder %s18, 1
      %p83 = scmp.ne.s32.totalorder %s78, %s80
      %p84 = scmp.eq.s32.totalorder %s18, 0
      %p85 = por %p83, %p84
      %p86 = scmp.ne.s32.totalorder %s78, %s80
      %p87 = scmp.eq.s32.totalorder %s23, 1
      %p88 = por %p86, %p87
      %p89 = scmp.ne.s32.totalorder %s80, %s81
      %p90 = scmp.eq.s32.totalorder %s23, 0
      %p91 = por %p89, %p90
      %p92 = scmp.ne.s32.totalorder %s80, %s81
      %p93 = scmp.eq.s32.totalorder %s24, 1
      %p94 = por %p92, %p93
      %p96 = scmp.ne.s32.totalorder %s81, %s95
      %p97 = scmp.eq.s32.totalorder %s24, 0
      %p98 = por %p96, %p97
      %s100 = sadd.s32 %s99, 1
      %p103 = scmp.eq.s32.totalorder %s18, 1
      %p104 = scmp.ne.s32.totalorder %s99, %s101
      %p105 = scmp.eq.s32.totalorder %s18, 0
      %p106 = por %p104, %p105
      %p107 = scmp.ne.s32.totalorder %s99, %s101
      %p108 = scmp.eq.s32.totalorder %s23, 1
      %p109 = por %p107, %p108
      %p110 = scmp.ne.s32.totalorder %s101, %s102
      %p111 = scmp.eq.s32.totalorder %s23, 0
      %p112 = por %p110, %p111
      %p113 = scmp.ne.s32.totalorder %s101, %s102
      %p114 = scmp.eq.s32.totalorder %s24, 1
      %p115 = por %p113, %p114
      %p117 = scmp.ne.s32.totalorder %s102, %s116
      %p118 = scmp.eq.s32.totalorder %s24, 0
      %p119 = por %p117, %p118
      %s121 = sadd.s32 %s120, 1
      %p124 = scmp.eq.s32.totalorder %s18, 1
      %p125 = scmp.ne.s32.totalorder %s120, %s122
      %p126 = scmp.eq.s32.totalorder %s18, 0
      %p127 = por %p125, %p126
      %p128 = scmp.ne.s32.totalorder %s120, %s122
      %p129 = scmp.eq.s32.totalorder %s23, 1
      %p130 = por %p128, %p129
      %p131 = scmp.ne.s32.totalorder %s122, %s123
      %p132 = scmp.eq.s32.totalorder %s23, 0
      %p133 = por %p131, %p132
      %p134 = scmp.ne.s32.totalorder %s122, %s123
      %p135 = scmp.eq.s32.totalorder %s24, 1
      %p136 = por %p134, %p135
      %p138 = scmp.ne.s32.totalorder %s123, %s137
      %p139 = scmp.eq.s32.totalorder %s24, 0
      %p140 = por %p138, %p139
      %s142 = sadd.s32 %s141, 1
      %p145 = scmp.eq.s32.totalorder %s18, 1
      %p146 = scmp.ne.s32.totalorder %s141, %s143
      %p147 = scmp.eq.s32.totalorder %s18, 0
      %p148 = por %p146, %p147
      %p149 = scmp.ne.s32.totalorder %s141, %s143
      %p150 = scmp.eq.s32.totalorder %s23, 1
      %p151 = por %p149, %p150
      %p152 = scmp.ne.s32.totalorder %s143, %s144
      %p153 = scmp.eq.s32.totalorder %s23, 0
      %p154 = por %p152, %p153
      %p155 = scmp.ne.s32.totalorder %s143, %s144
      %p156 = scmp.eq.s32.totalorder %s24, 1
      %p157 = por %p155, %p156
      %p159 = scmp.ne.s32.totalorder %s144, %s158
      %p160 = scmp.eq.s32.totalorder %s24, 0
      %p161 = por %p159, %p160
      %s163 = sadd.s32 %s162, 1
      %p166 = scmp.eq.s32.totalorder %s18, 1
      %p167 = scmp.ne.s32.totalorder %s162, %s164
      %p168 = scmp.eq.s32.totalorder %s18, 0
      %p169 = por %p167, %p168
      %p170 = scmp.ne.s32.totalorder %s162, %s164
      %p171 = scmp.eq.s32.totalorder %s23, 1
      %p172 = por %p170, %p171
      %p173 = scmp.ne.s32.totalorder %s164, %s165
      %p174 = scmp.eq.s32.totalorder %s23, 0
      %p175 = por %p173, %p174
      %p176 = scmp.ne.s32.totalorder %s164, %s165
      %p177 = scmp.eq.s32.totalorder %s24, 1
      %p178 = por %p176, %p177
      %p180 = scmp.ne.s32.totalorder %s165, %s179
      %p181 = scmp.eq.s32.totalorder %s24, 0
      %p182 = por %p180, %p181
      %s183 = ssub.s32 %s18, %s25
      %p184 = scmp.eq.s32.totalorder %s183, 0
      %s186 = sadd.s32 %s185, 1
      %s187 = scalar_select %p184, %s185, %s186
      %p190 = pneg %p184
      %p191 = scmp.eq.s32.totalorder %s18, 1
      %p192 = por %p190, %p191
      %p193 = scmp.ne.s32.totalorder %s185, %s188
      %p194 = scmp.eq.s32.totalorder %s18, 0
      %p195 = por %p193, %p194
      %p196 = scmp.ne.s32.totalorder %s185, %s188
      %p197 = scmp.eq.s32.totalorder %s23, 1
      %p198 = por %p196, %p197
      %p199 = scmp.ne.s32.totalorder %s188, %s189
      %p200 = scmp.eq.s32.totalorder %s23, 0
      %p201 = por %p199, %p200
      %p202 = scmp.ne.s32.totalorder %s188, %s189
      %p203 = scmp.eq.s32.totalorder %s24, 1
      %p204 = por %p202, %p203
      %p206 = scmp.ne.s32.totalorder %s189, %s205
      %p207 = scmp.eq.s32.totalorder %s24, 0
      %p208 = por %p206, %p207
      %p209 = scmp.le.s32.totalorder 1, %s18
      %p210 = scmp.lt.s32.totalorder %s18, 3
      %p211 = pnand %p209, %p210
      %p212 = pneg %p211
      // Predicated region
      $region9: #{tpu_custom_call.1} parent=5 // pred_check
        _
      $region10: #{tpu_custom_call.1} parent=5 // pred_check_branch
        %214 = sbr.rel (%p211) target = $region12
      $region11: #{tpu_custom_call.1} parent=5 // pred_region
        %s215 = ssub.s32 %s18, 1
        // Predicated region
        $region13: #{tpu_custom_call.1} parent=11 // pred_check
          %p216 = pneg %p91
        $region14: #{tpu_custom_call.1} parent=11 // pred_check_branch
          %218 = sbr.rel (%p216) target = $region16
        $region15: #{tpu_custom_call.1} parent=11 // pred_region
          _
        $region16: #{tpu_custom_call.1} parent=11 // pred_fallthru
          _
        // Predicated region
        $region17: #{tpu_custom_call.1} parent=11 // pred_check
          %p219 = pneg %p112
        $region18: #{tpu_custom_call.1} parent=11 // pred_check_branch
          %221 = sbr.rel (%p219) target = $region20
        $region19: #{tpu_custom_call.1} parent=11 // pred_region
          _
        $region20: #{tpu_custom_call.1} parent=11 // pred_fallthru
          _
        // Predicated region
        $region21: #{tpu_custom_call.1} parent=11 // pred_check
          %p222 = pneg %p133
        $region22: #{tpu_custom_call.1} parent=11 // pred_check_branch
          %224 = sbr.rel (%p222) target = $region24
        $region23: #{tpu_custom_call.1} parent=11 // pred_region
          %226 = vsyncadd [#allocation3], 0
          %s227 = sshll.u32 %s4, 4
          %s228 = int_to_ptr.hbm [resolvable:$true] %s227
          %s229 = sshll.u32 [#allocation2], 4
          %s230 = int_to_ptr.vmem [resolvable:$true] %s229
          %235 = dma.hbm_to_vmem [thread:$0]  %s228, 512, %s230, [#allocation3], 128, 128, 8
        $region24: #{tpu_custom_call.1} parent=11 // pred_fallthru
          _
        // Predicated region
        $region25: #{tpu_custom_call.1} parent=11 // pred_check
          %p236 = pneg %p154
        $region26: #{tpu_custom_call.1} parent=11 // pred_check_branch
          %238 = sbr.rel (%p236) target = $region28
        $region27: #{tpu_custom_call.1} parent=11 // pred_region
          _
        $region28: #{tpu_custom_call.1} parent=11 // pred_fallthru
          _
        // Predicated region
        $region29: #{tpu_custom_call.1} parent=11 // pred_check
          %p239 = pneg %p175
        $region30: #{tpu_custom_call.1} parent=11 // pred_check_branch
          %241 = sbr.rel (%p239) target = $region32
        $region31: #{tpu_custom_call.1} parent=11 // pred_region
          %243 = vsyncadd [#allocation5], 0
          %s245 = sshll.u32 %s6, 4
          %s246 = int_to_ptr.vmem [resolvable:$true] %s245
          %248 = dma.vmem_to_smem %s246, 16, [#allocation6], [#allocation5]
        $region32: #{tpu_custom_call.1} parent=11 // pred_fallthru
          _
      $region12: #{tpu_custom_call.1} parent=5 // pred_fallthru
        _
      %p249 = scmp.lt.s32.totalorder %s18, 2
      // Predicated region
      $region33: #{tpu_custom_call.1} parent=5 // pred_check
        %p250 = pneg %p249
      $region34: #{tpu_custom_call.1} parent=5 // pred_check_branch
        %252 = sbr.rel (%p250) target = $region36
      $region35: #{tpu_custom_call.1} parent=5 // pred_region
        // Predicated region
        $region37: #{tpu_custom_call.1} parent=35 // pred_check
          %p253 = pneg %p38
        $region38: #{tpu_custom_call.1} parent=35 // pred_check_branch
          %255 = sbr.rel (%p253) target = $region40
        $region39: #{tpu_custom_call.1} parent=35 // pred_region
          %p256 = scmp.lt.s32.totalorder %s18, 1
          %s257 = scalar_select %p256, %s18, 1
          %s258 = smul.addr %s257, 2
          %s259 = smul.addr %s258, 8
          %s260 = scalar_lea.vmem %s0, %s259
        $region40: #{tpu_custom_call.1} parent=35 // pred_fallthru
          _
        // Predicated region
        $region41: #{tpu_custom_call.1} parent=35 // pred_check
          %p261 = pneg %p64
        $region42: #{tpu_custom_call.1} parent=35 // pred_check_branch
          %263 = sbr.rel (%p261) target = $region44
        $region43: #{tpu_custom_call.1} parent=35 // pred_region
          %p264 = scmp.lt.s32.totalorder %s18, 1
          %s265 = scalar_select %p264, %s18, 1
          %s266 = smul.addr %s265, 2
          %s267 = smul.addr %s266, 8
          %s268 = scalar_lea.vmem %s1, %s267
        $region44: #{tpu_custom_call.1} parent=35 // pred_fallthru
          _
      $region36: #{tpu_custom_call.1} parent=5 // pred_fallthru
        _
      %p269 = scmp.le.s32.totalorder 1, %s18
      %p270 = scmp.lt.s32.totalorder %s18, 3
      %p271 = pnand %p269, %p270
      %p272 = pneg %p271
      // Predicated region
      $region45: #{tpu_custom_call.1} parent=5 // pred_check
        _
      $region46: #{tpu_custom_call.1} parent=5 // pred_check_branch
        %274 = sbr.rel (%p271) target = $region48
      $region47: #{tpu_custom_call.1} parent=5 // pred_region
        %s275 = ssub.s32 %s18, 1
        // Predicated region
        $region49: #{tpu_custom_call.1} parent=47 // pred_check
          %p276 = pneg %p133
        $region50: #{tpu_custom_call.1} parent=47 // pred_check_branch
          %278 = sbr.rel (%p276) target = $region52
        $region51: #{tpu_custom_call.1} parent=47 // pred_region
          %280 = dma.done [#allocation3], 512
        $region52: #{tpu_custom_call.1} parent=47 // pred_fallthru
          _
        // Predicated region
        $region53: #{tpu_custom_call.1} parent=47 // pred_check
          %p281 = pneg %p175
        $region54: #{tpu_custom_call.1} parent=47 // pred_check_branch
          %283 = sbr.rel (%p281) target = $region56
        $region55: #{tpu_custom_call.1} parent=47 // pred_region
          %285 = dma.done [#allocation5], 16
        $region56: #{tpu_custom_call.1} parent=47 // pred_fallthru
          _
        %286 = sfence
        %p287 = scmp.lt.s32.totalorder %s23, 1
        %s288 = scalar_select %p287, %s23, 1
        %s289 = smul.addr %s288, 2
        %s290 = smul.addr %s289, 8
        %s291 = scalar_lea.vmem %s0, %s290
        %p292 = pneg %p44
        %p293 = pneg %p41
        %p294 = scmp.lt.s32.totalorder %s23, 1
        %s295 = scalar_select %p294, %s23, 1
        %s296 = smul.addr %s295, 2
        %s297 = smul.addr %s296, 8
        %s298 = scalar_lea.vmem %s1, %s297
        %p299 = pneg %p70
        %p300 = pneg %p67
        %p301 = pneg %p91
        %p302 = pneg %p88
        %p303 = pneg %p112
        %p304 = pneg %p109
        %p305 = pneg %p133
        %p306 = pneg %p130
        %p307 = pneg %p154
        %p308 = pneg %p151
        %p309 = pneg %p175
        %p310 = pneg %p172
        %p311 = pneg %p201
        %p312 = pneg %p198
        %s313 = sand.u32 %s188, 1
        %s314 = scalar_lea.sflag [#allocation4], %s313
        %s315 = sand.u32 %s188, 1
        %s316 = smul.addr %s315, 16
        %s317 = scalar_lea.vmem [#allocation7], %s316
        %p318 = scmp.lt.s32.totalorder %s23, 1
        %s319 = scalar_select %p318, %s23, 1
        %s320 = smul.addr %s319, 2
        %s321 = smul.addr %s320, 8
        %s322 = scalar_lea.vmem %s0, %s321
        %p323 = scmp.lt.s32.totalorder %s23, 1
        %s324 = scalar_select %p323, %s23, 1
        %s325 = smul.addr %s324, 2
        %s326 = smul.addr %s325, 8
        %s327 = scalar_lea.vmem %s1, %s326
        %s328 = sld [smem:[#allocation6]]
        %s329 = sld [smem:[#allocation6 + $0x1]]
        %v330 = vlaneseq
        %v331 = vshrl.u32 %v330, 7
        %v332 = vadd.s32 %v331, 8
        %v333 = vlaneseq
        %v334 = vand.u32 %v333, 127
        %vm335 = vcmp.eq.s32.totalorder %v331, %v334
        %vm336 = vcmp.eq.s32.totalorder %v332, %v334
        %v337 = vld [vmem:[%s327] sm:$0xff]
        %v338 = vld [vmem:[%s327 + $0x8] sm:$0xff]
        %v339 = vsel %vm335, 1.0, %v337
        %v340 = vsel %vm336, 1.0, %v338
        %vm341 = vcmask 130048
        %v342 = vsel %vm341, %v339, 0.0
        %343 = vadd.xlane.f32.xlu0 %v342
        %v344 = vpop.xlane.xlu0 %343
        %v345 = vsel %vm341, %v340, 0.0
        %346 = vadd.xlane.f32.xlu0 %v345
        %v347 = vpop.xlane.xlu0 %346
        %v348 = vmax.f32 %v344, 1.0
        %v349 = vmax.f32 %v347, 1.0
        %v350 = vrsqrt.pop %v348
        %v351 = vmul.f32 %v350, %v348
        %v352 = vmul.f32 %v351, %v350
        %v353 = vmul.f32 0.5, %v352
        %v354 = vsub.f32 1.5, %v353
        %v355 = vmul.f32 %v350, %v354
        %vm356 = vweird.f32 %v348
        %vm357 = vweird.f32 %v350
        %vm358 = vmor %vm356, %vm357
        %v359 = vsel %vm358, %v350, %v355
        %v360 = vrsqrt.pop %v349
        %v361 = vmul.f32 %v360, %v349
        %v362 = vmul.f32 %v361, %v360
        %v363 = vmul.f32 0.5, %v362
        %v364 = vsub.f32 1.5, %v363
        %v365 = vmul.f32 %v360, %v364
        %vm366 = vweird.f32 %v349
        %vm367 = vweird.f32 %v360
        %vm368 = vmor %vm366, %vm367
        %v369 = vsel %vm368, %v360, %v365
        %v370 = vld [vmem:[%s3] sm:$0x1]
        %v371 = vld [vmem:[%s5] sm:$0x1]
        %v372 = vld [vmem:[%s322] sm:$0xff]
        %v373 = vld [vmem:[%s322 + $0x8] sm:$0xff]
        %v374 = vld [vmem:[%s2] sm:$0xff]
        %vm375 = vcmask 64512
        %v377 = vsel %vm375, %v372, 0
        %v380 = vsel %vm375, %v373, 0
        %382 = vmatpush.msra.mxu0 0.0
        %383 = vmatpush.msra.mxu0 0.0
        %384 = vmatpush.msra.mxu0 0.0
        %385 = vmatpush.msra.mxu0 0.0
        %386 = vmatpush.msra.mxu0 0.0
        %387 = vmatpush.msra.mxu0 0.0
        %388 = vmatpush.msra.mxu0 0.0
        %389 = vmatpush.msra.mxu0 0.0
        %390 = vmatpush.msra.mxu0 0.0
        %391 = vmatpush.msra.mxu0 0.0
        %392 = vmatpush.msra.mxu0 0.0
        %393 = vmatpush.msra.mxu0 0.0
        %394 = vmatpush.msra.mxu0 0.0
        %395 = vmatpush.msra.mxu0 0.0
        %396 = vmatpush.msra.mxu0 0.0
        %397 = vmatpush.msra.mxu0 %v374
        %398 = vmatmul.f32.gmra.mxu0 %v377
        %v399 = vpop.f32.mrf.mxu0
        %v400 = vadd.f32 0.0, %v399
        %401 = vmatmul.f32.gmra.mxu0 %v380
        %v402 = vpop.f32.mrf.mxu0
        %v403 = vadd.f32 0.0, %v402
        %404 = vdwg.mxu0
        %v405 = vmul.f32 %v359, %v400
        %v406 = vmul.f32 %v369, %v403
        %v408 = vsel %vm341, %v339, 0
        %v411 = vsel %vm341, %v340, 0
        %413 = vmatpush.msra.mxu0 0.0
        %414 = vmatpush.msra.mxu0 0.0
        %415 = vmatpush.msra.mxu0 0.0
        %416 = vmatpush.msra.mxu0 0.0
        %417 = vmatpush.msra.mxu0 0.0
        %418 = vmatpush.msra.mxu0 0.0
        %419 = vmatpush.msra.mxu0 0.0
        %420 = vmatpush.msra.mxu0 0.0
        %421 = vmatpush.msra.mxu0 0.0
        %422 = vmatpush.msra.mxu0 0.0
        %423 = vmatpush.msra.mxu0 0.0
        %424 = vmatpush.msra.mxu0 0.0
        %425 = vmatpush.msra.mxu0 0.0
        %426 = vmatpush.msra.mxu0 0.0
        %427 = vmatpush.msra.mxu0 %v406
        %428 = vmatpush.msra.mxu0 %v405
        %429 = vmatmul.f32.gmra.mxu0 %v408
        %v430 = vpop.f32.mrf.mxu0
        %v431 = vadd.f32 0.0, %v430
        %432 = vmatmul.f32.gmra.mxu0 %v411
        %v433 = vpop.f32.mrf.mxu0
        %v434 = vadd.f32 0.0, %v433
        %435 = vdwg.mxu0
        %v436 = vmul.f32 %v359, %v431
        %v437 = vmul.f32 %v369, %v434
        %v439 = vperm.slane %v370, 0
        %v441 = vadd.f32 %v436, %v439
        %v442 = vadd.f32 %v437, %v439
        %v443 = vmax.f32 %v441, 0.0
        %v444 = vmax.f32 %v442, 0.0
        %v445 = vmin.f32 %v441, 0.0
        %v446 = vmin.f32 %v442, 0.0
        %v447 = vstv %s328
        %v448 = vmul.f32 %v447, %v445
        %v449 = vmul.f32 %v447, %v446
        %v450 = vadd.f32 %v443, %v448
        %v451 = vadd.f32 %v444, %v449
        %v452 = vld [vmem:[#allocation2] sm:$0xff]
        %v453 = vld [vmem:[#allocation2 + $0x8] sm:$0xff]
        %v454 = vld [vmem:[#allocation2 + $0x10] sm:$0xff]
        %v455 = vld [vmem:[#allocation2 + $0x18] sm:$0xff]
        %vm456 = vcmask 261120
        %v458 = vsel %vm456, %v450, 0
        %v461 = vsel %vm456, %v451, 0
        %463 = vmatpush.msra.mxu0 0.0
        %464 = vmatpush.msra.mxu0 0.0
        %465 = vmatpush.msra.mxu0 0.0
        %466 = vmatpush.msra.mxu0 0.0
        %467 = vmatpush.msra.mxu0 0.0
        %468 = vmatpush.msra.mxu0 0.0
        %469 = vmatpush.msra.mxu0 0.0
        %470 = vmatpush.msra.mxu0 0.0
        %471 = vmatpush.msra.mxu0 0.0
        %472 = vmatpush.msra.mxu0 0.0
        %473 = vmatpush.msra.mxu0 0.0
        %474 = vmatpush.msra.mxu0 0.0
        %475 = vmatpush.msra.mxu0 %v455
        %476 = vmatpush.msra.mxu0 %v454
        %477 = vmatpush.msra.mxu0 %v453
        %478 = vmatpush.msra.mxu0 %v452
        %479 = vmatmul.f32.gmra.mxu0 %v458
        %v480 = vpop.f32.mrf.mxu0
        %v481 = vadd.f32 0.0, %v480
        %482 = vmatmul.f32.gmra.mxu0 %v461
        %v483 = vpop.f32.mrf.mxu0
        %v484 = vadd.f32 0.0, %v483
        %485 = vdwg.mxu0
        %v486 = vmul.f32 %v359, %v481
        %v487 = vmul.f32 %v369, %v484
        %488 = vmatpush.msra.mxu0 0.0
        %489 = vmatpush.msra.mxu0 0.0
        %490 = vmatpush.msra.mxu0 0.0
        %491 = vmatpush.msra.mxu0 0.0
        %492 = vmatpush.msra.mxu0 0.0
        %493 = vmatpush.msra.mxu0 0.0
        %494 = vmatpush.msra.mxu0 0.0
        %495 = vmatpush.msra.mxu0 0.0
        %496 = vmatpush.msra.mxu0 0.0
        %497 = vmatpush.msra.mxu0 0.0
        %498 = vmatpush.msra.mxu0 0.0
        %499 = vmatpush.msra.mxu0 0.0
        %500 = vmatpush.msra.mxu0 0.0
        %501 = vmatpush.msra.mxu0 0.0
        %502 = vmatpush.msra.mxu0 %v487
        %503 = vmatpush.msra.mxu0 %v486
        %504 = vmatmul.f32.gmra.mxu0 %v408
        %v505 = vpop.f32.mrf.mxu0
        %v506 = vadd.f32 0.0, %v505
        %507 = vmatmul.f32.gmra.mxu0 %v411
        %v508 = vpop.f32.mrf.mxu0
        %v509 = vadd.f32 0.0, %v508
        %510 = vdwg.mxu0
        %v511 = vmul.f32 %v359, %v506
        %v512 = vmul.f32 %v369, %v509
        %v514 = vperm.slane %v371, 0
        %v516 = vadd.f32 %v511, %v514
        %v517 = vadd.f32 %v512, %v514
        %v518 = vmax.f32 %v516, 0.0
        %v519 = vmax.f32 %v517, 0.0
        %v520 = vmin.f32 %v516, 0.0
        %v521 = vmin.f32 %v517, 0.0
        %v522 = vstv %s329
        %v523 = vmul.f32 %v522, %v520
        %v524 = vmul.f32 %v522, %v521
        %v525 = vadd.f32 %v518, %v523
        %v526 = vadd.f32 %v519, %v524
        %527 = vst [vmem:[%s317] sm:$0xff] %v525
        %528 = vst [vmem:[%s317 + $0x8] sm:$0xff] %v526
        %s529 = sand.u32 %s188, 1
        %s530 = scalar_lea.sflag [#allocation4], %s529
        %s531 = sand.u32 %s188, 1
        %s532 = smul.addr %s531, 16
        %s533 = scalar_lea.vmem [#allocation7], %s532
        // Predicated region
        $region57: #{tpu_custom_call.1} parent=47 // pred_check
          %p534 = pneg %p198
        $region58: #{tpu_custom_call.1} parent=47 // pred_check_branch
          %536 = sbr.rel (%p534) target = $region60
        $region59: #{tpu_custom_call.1} parent=47 // pred_region
          %538 = vsyncadd %s530, 0
          %s539 = smul.addr %s23, 2
          %s540 = smul.addr %s539, 8
          %s541 = scalar_lea.hbm %s7, %s540
          %s542 = sshll.u32 %s533, 4
          %s543 = int_to_ptr.vmem [resolvable:$true] %s542
          %s544 = sshll.u32 %s541, 4
          %s545 = int_to_ptr.hbm [resolvable:$true] %s544
          %550 = dma.vmem_to_hbm [thread:$0]  %s543, 256, %s545, %s530, 128, 128, 8
        $region60: #{tpu_custom_call.1} parent=47 // pred_fallthru
          _
      $region48: #{tpu_custom_call.1} parent=5 // pred_fallthru
        _
      %p551 = scmp.le.s32.totalorder 2, %s18
      // Predicated region
      $region61: #{tpu_custom_call.1} parent=5 // pred_check
        %p552 = pneg %p551
      $region62: #{tpu_custom_call.1} parent=5 // pred_check_branch
        %554 = sbr.rel (%p552) target = $region64
      $region63: #{tpu_custom_call.1} parent=5 // pred_region
        %s555 = ssub.s32 %s18, 2
        // Predicated region
        $region65: #{tpu_custom_call.1} parent=63 // pred_check
          %p556 = pneg %p204
        $region66: #{tpu_custom_call.1} parent=63 // pred_check_branch
          %558 = sbr.rel (%p556) target = $region68
        $region67: #{tpu_custom_call.1} parent=63 // pred_region
          %s559 = sand.u32 %s189, 1
          %s560 = scalar_lea.sflag [#allocation4], %s559
          %s561 = sand.u32 %s189, 1
          %s562 = smul.addr %s561, 16
          %s563 = scalar_lea.vmem [#allocation7], %s562
          %565 = dma.done %s560, 256
        $region68: #{tpu_custom_call.1} parent=63 // pred_fallthru
          _
      $region64: #{tpu_custom_call.1} parent=5 // pred_fallthru
        _
    $region6: #{tpu_custom_call.1} parent=1 // loop_footer
      %s22 = sadd.s32 1, %s18
    $region7: #{tpu_custom_call.1} parent=1 // loop_footer_branch
      %17 = sbr.rel target = $region3
    $region8: #{tpu_custom_call.1} parent=1 // loop_exit
      _
    %566 = vsyncpa [#allocation3], 1
    %s567 = scalar_lea.sflag [#allocation3], 1
    %568 = vsyncpa %s567, 1
    %569 = vsyncpa [#allocation4], 1
    %s570 = scalar_lea.sflag [#allocation4], 1
    %571 = vsyncpa %s570, 1
    %572 = vsyncpa [#allocation5], 1
    %s573 = scalar_lea.sflag [#allocation5], 1
    %574 = vsyncpa %s573, 1

</llo_original>
